<compile_context>
chip_gen: v6e
topology: v6e:2x2x1
jax: 0.10.0
libtpu: 0.0.40
codegen_flags: <defaults>
</compile_context>

<pallas_src>
import functools

import jax
import jax.numpy as jnp
from jax.experimental import pallas as pl
from jax.experimental.pallas import tpu as pltpu


# ----------------------------------------------------------------------------
# Pallas kernel: fused, row-packed VAE forward (gaussian decoder, scaled mean)
# ----------------------------------------------------------------------------
def _vae_packed_kernel(
    x_ref, eps_ref,
    w1_ref, b1_ref,
    w2m_ref, b2m_ref,
    w2s_ref, b2s_ref,
    w3_ref, b3_ref,
    w4m_ref, b4m_ref,
    w4s_ref, b4s_ref,
    mu_ref, ls_ref, muz_ref, lsz_ref,
):
    f32 = jnp.float32
    bf16 = jnp.bfloat16

    # f32 tiles straight from HBM; cast to bf16 in-kernel (VPU, hidden by MXU)
    xb = x_ref[...].astype(bf16)                         # (blk_g, P*d)
    eps = eps_ref[...]                                   # (blk_g, P*nz) f32

    # encoder: h1 = tanh(fc1(x))  -- f32 accumulation, f32 VPU/EUP math
    h1 = jnp.tanh(
        jnp.dot(xb, w1_ref[...], preferred_element_type=f32) + b1_ref[...]
    )                                                    # (blk_g, P*H) f32
    h1b = h1.astype(bf16)

    # latent heads (packed block-diagonal weights)
    mu_z = jnp.dot(h1b, w2m_ref[...], preferred_element_type=f32) + b2m_ref[...]
    log_sigma_z = jnp.dot(h1b, w2s_ref[...], preferred_element_type=f32) + b2s_ref[...]

    # reparameterization: z = mu_z + exp(log_sigma_z) * eps   (all f32)
    z = mu_z + jnp.exp(log_sigma_z) * eps                # (blk_g, P*nz)

    # decoder: h3 = tanh(fc3(z))
    h3 = jnp.tanh(
        jnp.dot(z.astype(bf16), w3_ref[...], preferred_element_type=f32)
        + b3_ref[...]
    )                                                    # (blk_g, P*H)
    h3b = h3.astype(bf16)

    mu_pre = jnp.dot(h3b, w4m_ref[...], preferred_element_type=f32) + b4m_ref[...]
    log_sigma = jnp.dot(h3b, w4s_ref[...], preferred_element_type=f32) + b4s_ref[...]

    # scaled_mean=True -> sigmoid; written as one EUP tanh
    mu = 0.5 * (jnp.tanh(0.5 * mu_pre) + 1.0)

    # four direct, lane-dense whole-block stores (no concat, no shuffles)
    mu_ref[...] = mu.astype(mu_ref.dtype)                # bf16
    ls_ref[...] = log_sigma.astype(ls_ref.dtype)         # bf16
    muz_ref[...] = mu_z                                  # f32 (KL numerics)
    lsz_ref[...] = log_sigma_z                           # f32


# ----------------------------------------------------------------------------
# One-time weight preparation: block-diagonal row packing + bf16 cast
# ----------------------------------------------------------------------------
def pack_params(params, *, p=8):
    """Build row-packed (block-diagonal) bf16 weights / tiled f32 biases once."""
    def bd(w):                                # (k, n) -> (p*k, p*n) block-diag
        return jnp.kron(jnp.eye(p, dtype=jnp.float32), w).astype(jnp.bfloat16)

    def bt(b):                                # (1, n) -> (1, p*n)
        return jnp.tile(b, (1, p))

    return {
        "p": p,
        "w1": bd(params["w1"]), "b1": bt(params["b1"]),
        "w2m": bd(params["w2_mu"]), "b2m": bt(params["b2_mu"]),
        "w2s": bd(params["w2_sigma"]), "b2s": bt(params["b2_sigma"]),
        "w3": bd(params["w3"]), "b3": bt(params["b3"]),
        "w4m": bd(params["w4_mu"]), "b4m": bt(params["b4_mu"]),
        "w4s": bd(params["w4_sigma"]), "b4s": bt(params["b4_sigma"]),
    }


# ----------------------------------------------------------------------------
# Wrapper
# ----------------------------------------------------------------------------
def vae_forward(x, eps, packed, *, d, h_num, nz, block_rows=4096):
    """Fused VAE forward.  Returns (mu, mu_z, log_sigma, log_sigma_z).

    mu / log_sigma are returned in bf16 (upcast fuses into the consumer);
    mu_z / log_sigma_z stay f32.
    """
    p = packed["w1"].shape[0] // d            # rows packed per lane group
    pd_, ph, pz = p * d, p * h_num, p * nz

    x2d = x.reshape(-1, d).astype(jnp.float32)
    eps = eps.astype(jnp.float32)
    batch = x2d.shape[0]

    # ---- group-block sizing -------------------------------------------------
    groups = pl.cdiv(batch, p)
    if groups < 32:
        # small batch: one full-array block (always layout-legal)
        blk_g = groups
    else:
        cap_g = max(16, (block_rows // p // 16) * 16)
        half_g = max(16, (((groups + 1) // 2) // 16) * 16)   # >=2 blocks for 2 TCs
        blk_g = min(cap_g, half_g)
    padded_groups = pl.cdiv(groups, blk_g) * blk_g
    padded_rows = padded_groups * p
    pad = padded_rows - batch

    if pad:
        x2d = jnp.pad(x2d, ((0, pad), (0, 0)))
        eps = jnp.pad(eps, ((0, pad), (0, 0)))

    # free contiguous reshapes into the packed layout
    xp = x2d.reshape(padded_groups, pd_)
    epsp = eps.reshape(padded_groups, pz)

    n_blocks = padded_groups // blk_g

    def resident(a):
        # whole-array block, constant index -> stays VMEM-resident across grid
        return pl.BlockSpec(a.shape, lambda i: (0,) * a.ndim)

    grid_spec = pl.GridSpec(
        grid=(n_blocks,),
        in_specs=[
            pl.BlockSpec((blk_g, pd_), lambda i: (i, 0)),    # packed x tile
            pl.BlockSpec((blk_g, pz), lambda i: (i, 0)),     # packed eps tile
            resident(packed["w1"]), resident(packed["b1"]),
            resident(packed["w2m"]), resident(packed["b2m"]),
            resident(packed["w2s"]), resident(packed["b2s"]),
            resident(packed["w3"]), resident(packed["b3"]),
            resident(packed["w4m"]), resident(packed["b4m"]),
            resident(packed["w4s"]), resident(packed["b4s"]),
        ],
        out_specs=[
            pl.BlockSpec((blk_g, pd_), lambda i: (i, 0)),    # mu (bf16)
            pl.BlockSpec((blk_g, pd_), lambda i: (i, 0)),    # log_sigma (bf16)
            pl.BlockSpec((blk_g, pz), lambda i: (i, 0)),     # mu_z (f32)
            pl.BlockSpec((blk_g, pz), lambda i: (i, 0)),     # log_sigma_z (f32)
        ],
    )

    out_shape = (
        jax.ShapeDtypeStruct((padded_groups, pd_), jnp.bfloat16),
        jax.ShapeDtypeStruct((padded_groups, pd_), jnp.bfloat16),
        jax.ShapeDtypeStruct((padded_groups, pz), jnp.float32),
        jax.ShapeDtypeStruct((padded_groups, pz), jnp.float32),
    )

    w_keys = ("w1", "b1", "w2m", "b2m", "w2s", "b2s",
              "w3", "b3", "w4m", "b4m", "w4s", "b4s")
    w_bytes = sum(int(packed[k].size) * packed[k].dtype.itemsize for k in w_keys)
    cost = pl.CostEstimate(
        flops=int(2 * padded_groups
                  * (pd_ * ph + ph * pz * 2 + pz * ph + ph * pd_ * 2)),
        transcendentals=int(padded_groups * (2 * ph + pz + pd_)),
        bytes_accessed=int(xp.size * 4 + epsp.size * 4 + w_bytes
                           + padded_groups * (pd_ * 2 * 2 + pz * 4 * 2)),
    )

    fn = pl.pallas_call(
        _vae_packed_kernel,
        grid_spec=grid_spec,
        out_shape=out_shape,
        compiler_params=pltpu.CompilerParams(
            dimension_semantics=("parallel",)),      # batch axis over both TCs (v7x)
        cost_estimate=cost,
    )
    mu_p, ls_p, muz_p, lsz_p = fn(
        xp, epsp,
        packed["w1"], packed["b1"],
        packed["w2m"], packed["b2m"],
        packed["w2s"], packed["b2s"],
        packed["w3"], packed["b3"],
        packed["w4m"], packed["b4m"],
        packed["w4s"], packed["b4s"],
    )

    # free unpacking reshapes, then drop padded rows
    mu = mu_p.reshape(padded_rows, d)[:batch]
    log_sigma = ls_p.reshape(padded_rows, d)[:batch]
    mu_z = muz_p.reshape(padded_rows, nz)[:batch]
    log_sigma_z = lsz_p.reshape(padded_rows, nz)[:batch]
    return mu, mu_z, log_sigma, log_sigma_z

# TODO(synk): non-gaussian ('bernoulli') decoder branch (plain fc4 output and
# the literal '_' placeholder string) is not implemented; only the default
# gaussian / scaled_mean=True path is reproduced here.  eps is sampled once
# and passed in (PyTorch uses torch.randn_like inside forward); it could be
# generated in-kernel with pltpu.prng_seed / pltpu.stateful_normal to save
# another 32 B/row, at the cost of an exactly-checkable reference.


# ----------------------------------------------------------------------------
# Deterministic parameter init (PyTorch nn.Linear-style uniform init)
# ----------------------------------------------------------------------------
def init_params(key, d, h_num, nz):
    def linear(key, fan_in, fan_out):
        kw, kb = jax.random.split(key)
        bound = 1.0 / jnp.sqrt(fan_in)
        w = jax.random.uniform(kw, (fan_in, fan_out), jnp.float32, -bound, bound)
        b = jax.random.uniform(kb, (1, fan_out), jnp.float32, -bound, bound)
        return w, b

    keys = jax.random.split(key, 6)
    w1, b1 = linear(keys[0], d, h_num)
    w2m, b2m = linear(keys[1], h_num, nz)
    w2s, b2s = linear(keys[2], h_num, nz)
    w3, b3 = linear(keys[3], nz, h_num)
    w4m, b4m = linear(keys[4], h_num, d)
    w4s, b4s = linear(keys[5], h_num, d)
    return {
        "w1": w1, "b1": b1,
        "w2_mu": w2m, "b2_mu": b2m,
        "w2_sigma": w2s, "b2_sigma": b2s,
        "w3": w3, "b3": b3,
        "w4_mu": w4m, "b4_mu": b4m,
        "w4_sigma": w4s, "b4_sigma": b4s,
    }


# ----------------------------------------------------------------------------
# Pure-JAX reference with matched (bf16 matmul inputs / f32 accum) precision
# ----------------------------------------------------------------------------
def vae_forward_ref(x, eps, p, *, d):
    bf = lambda k: p[k].astype(jnp.bfloat16)
    x2d = x.reshape(-1, d).astype(jnp.bfloat16)
    eps_f = eps.astype(jnp.float32)

    h1 = jnp.tanh(jnp.dot(x2d, bf("w1"), preferred_element_type=jnp.float32)
                  + p["b1"])
    h1b = h1.astype(jnp.bfloat16)
    mu_z = jnp.dot(h1b, bf("w2_mu"), preferred_element_type=jnp.float32) + p["b2_mu"]
    log_sigma_z = (jnp.dot(h1b, bf("w2_sigma"), preferred_element_type=jnp.float32)
                   + p["b2_sigma"])
    z = (mu_z + jnp.exp(log_sigma_z) * eps_f).astype(jnp.bfloat16)
    h3 = jnp.tanh(jnp.dot(z, bf("w3"), preferred_element_type=jnp.float32) + p["b3"])
    h3b = h3.astype(jnp.bfloat16)
    mu_pre = jnp.dot(h3b, bf("w4_mu"), preferred_element_type=jnp.float32) + p["b4_mu"]
    log_sigma = (jnp.dot(h3b, bf("w4_sigma"), preferred_element_type=jnp.float32)
                 + p["b4_sigma"])
    mu = 0.5 * (jnp.tanh(0.5 * mu_pre) + 1.0)    # == sigmoid(mu_pre)
    return mu, mu_z, log_sigma, log_sigma_z


if __name__ == "__main__":
    # Shapes consistent with the module: flattened feature dim d = 16,
    # hidden = 32, Nz = 8; input x of shape (2, 4, 16, 16) -> view(-1, 16)
    # -> 128 rows (16 packed groups at P=8).
    D, H, NZ = 16, 32, 8
    key = jax.random.PRNGKey(0)
    kx, keps, kparams, kx2, keps2 = jax.random.split(key, 5)

    params = init_params(kparams, D, H, NZ)
    packed = pack_params(params, p=8)          # one-time weight prep

    # ---- Case 1: module-shaped input ---------------------------------------
    x = jax.random.normal(kx, (2, 4, 16, D), jnp.float32)
    batch = x.reshape(-1, D).shape[0]
    # eps plays the role of torch.randn_like(mu_z) — sampled once, passed in.
    eps = jax.random.normal(keps, (batch, NZ), jnp.float32)

    mu, mu_z, log_sigma, log_sigma_z = vae_forward(
        x, eps, packed, d=D, h_num=H, nz=NZ)
    jax.block_until_ready((mu, mu_z, log_sigma, log_sigma_z))

    r_mu, r_mu_z, r_ls, r_lsz = vae_forward_ref(x, eps, params, d=D)
    assert mu.shape == (batch, D) and log_sigma.shape == (batch, D)
    assert mu_z.shape == (batch, NZ) and log_sigma_z.shape == (batch, NZ)
    # mu / log_sigma are stored in bf16 -> compare with bf16-level tolerance
    assert jnp.allclose(mu.astype(jnp.float32), r_mu, atol=2e-2, rtol=2e-2)
    assert jnp.allclose(log_sigma.astype(jnp.float32), r_ls, atol=2e-2, rtol=2e-2)
    # latent stats stay f32
    assert jnp.allclose(mu_z, r_mu_z, atol=5e-3, rtol=5e-3)
    assert jnp.allclose(log_sigma_z, r_lsz, atol=5e-3, rtol=5e-3)

    # ---- Case 2: ragged batch (padding + multi-block "parallel" grid) -------
    x2 = jax.random.normal(kx2, (1000, D), jnp.float32)
    eps2 = jax.random.normal(keps2, (1000, NZ), jnp.float32)
    outs2 = vae_forward(x2, eps2, packed, d=D, h_num=H, nz=NZ)
    jax.block_until_ready(outs2)
    refs2 = vae_forward_ref(x2, eps2, params, d=D)
    tols = [(2e-2, 2e-2), (5e-3, 5e-3), (2e-2, 2e-2), (5e-3, 5e-3)]
    ref_order = (refs2[0], refs2[1], refs2[2], refs2[3])
    out_order = (outs2[0], outs2[1], outs2[2], outs2[3])
    for a, b, (at, rt) in zip(out_order, ref_order, tols):
        assert a.shape == b.shape
        assert jnp.allclose(a.astype(jnp.float32), b, atol=at, rtol=rt)

    print("KERNEL_OK")
</pallas_src>

<mosaic_0001>
module attributes {stable_mosaic.version = 11 : i64} {
  func.func @_vae_packed_kernel(%arg0: i32, %arg1: memref<16x128xf32, #tpu.memory_space<vmem>>, %arg2: memref<16x64xf32, #tpu.memory_space<vmem>>, %arg3: memref<128x256xbf16, #tpu.memory_space<vmem>>, %arg4: memref<1x256xf32, #tpu.memory_space<vmem>>, %arg5: memref<256x64xbf16, #tpu.memory_space<vmem>>, %arg6: memref<1x64xf32, #tpu.memory_space<vmem>>, %arg7: memref<256x64xbf16, #tpu.memory_space<vmem>>, %arg8: memref<1x64xf32, #tpu.memory_space<vmem>>, %arg9: memref<64x256xbf16, #tpu.memory_space<vmem>>, %arg10: memref<1x256xf32, #tpu.memory_space<vmem>>, %arg11: memref<256x128xbf16, #tpu.memory_space<vmem>>, %arg12: memref<1x128xf32, #tpu.memory_space<vmem>>, %arg13: memref<256x128xbf16, #tpu.memory_space<vmem>>, %arg14: memref<1x128xf32, #tpu.memory_space<vmem>>, %arg15: memref<16x128xbf16, #tpu.memory_space<vmem>>, %arg16: memref<16x128xbf16, #tpu.memory_space<vmem>>, %arg17: memref<16x64xf32, #tpu.memory_space<vmem>>, %arg18: memref<16x64xf32, #tpu.memory_space<vmem>>) attributes {dimension_semantics = [#tpu.dimension_semantics<parallel>], iteration_bounds = array<i64: 1>, scalar_prefetch = 0 : i64, scratch_operands = 0 : i64, tpu.core_type = #tpu.core_type<tc>, window_params = [{transform_indices = @transform_0, window_bounds = array<i64: 16, 128>}, {transform_indices = @transform_1, window_bounds = array<i64: 16, 64>}, {pipeline_mode = #tpu.pipeline_mode<synchronous>, transform_indices = @transform_2, window_bounds = array<i64: 128, 256>}, {pipeline_mode = #tpu.pipeline_mode<synchronous>, transform_indices = @transform_3, window_bounds = array<i64: 1, 256>}, {pipeline_mode = #tpu.pipeline_mode<synchronous>, transform_indices = @transform_4, window_bounds = array<i64: 256, 64>}, {pipeline_mode = #tpu.pipeline_mode<synchronous>, transform_indices = @transform_5, window_bounds = array<i64: 1, 64>}, {pipeline_mode = #tpu.pipeline_mode<synchronous>, transform_indices = @transform_6, window_bounds = array<i64: 256, 64>}, {pipeline_mode = #tpu.pipeline_mode<synchronous>, transform_indices = @transform_7, window_bounds = array<i64: 1, 64>}, {pipeline_mode = #tpu.pipeline_mode<synchronous>, transform_indices = @transform_8, window_bounds = array<i64: 64, 256>}, {pipeline_mode = #tpu.pipeline_mode<synchronous>, transform_indices = @transform_9, window_bounds = array<i64: 1, 256>}, {pipeline_mode = #tpu.pipeline_mode<synchronous>, transform_indices = @transform_10, window_bounds = array<i64: 256, 128>}, {pipeline_mode = #tpu.pipeline_mode<synchronous>, transform_indices = @transform_11, window_bounds = array<i64: 1, 128>}, {pipeline_mode = #tpu.pipeline_mode<synchronous>, transform_indices = @transform_12, window_bounds = array<i64: 256, 128>}, {pipeline_mode = #tpu.pipeline_mode<synchronous>, transform_indices = @transform_13, window_bounds = array<i64: 1, 128>}, {transform_indices = @transform_14, window_bounds = array<i64: 16, 128>}, {transform_indices = @transform_15, window_bounds = array<i64: 16, 128>}, {transform_indices = @transform_16, window_bounds = array<i64: 16, 64>}, {transform_indices = @transform_17, window_bounds = array<i64: 16, 64>}]} {
    %c0 = arith.constant 0 : index
    %c0_0 = arith.constant 0 : index
    %0 = vector.load %arg1[%c0, %c0_0] : memref<16x128xf32, #tpu.memory_space<vmem>>, vector<16x128xf32>
    %1 = arith.truncf %0 : vector<16x128xf32> to vector<16x128xbf16>
    %c0_1 = arith.constant 0 : index
    %c0_2 = arith.constant 0 : index
    %2 = vector.load %arg2[%c0_1, %c0_2] : memref<16x64xf32, #tpu.memory_space<vmem>>, vector<16x64xf32>
    %c0_3 = arith.constant 0 : index
    %c0_4 = arith.constant 0 : index
    %3 = vector.load %arg3[%c0_3, %c0_4] : memref<128x256xbf16, #tpu.memory_space<vmem>>, vector<128x256xbf16>
    %cst = arith.constant dense<0.000000e+00> : vector<16x256xf32>
    %4 = tpu.matmul %1, %3, %cst {dimension_numbers = #tpu.dot_dimension_numbers<[1], [0], [0], [1], [0, 0, 1, 1], [], []>} : vector<16x128xbf16>, vector<128x256xbf16>, vector<16x256xf32> -> vector<16x256xf32>
    %c0_5 = arith.constant 0 : index
    %c0_6 = arith.constant 0 : index
    %5 = vector.load %arg4[%c0_5, %c0_6] : memref<1x256xf32, #tpu.memory_space<vmem>>, vector<1x256xf32>
    %6 = vector.broadcast %5 : vector<1x256xf32> to vector<16x256xf32>
    %7 = arith.addf %4, %6 : vector<16x256xf32>
    %8 = math.tanh %7 : vector<16x256xf32>
    %9 = arith.truncf %8 : vector<16x256xf32> to vector<16x256xbf16>
    %c0_7 = arith.constant 0 : index
    %c0_8 = arith.constant 0 : index
    %10 = vector.load %arg5[%c0_7, %c0_8] : memref<256x64xbf16, #tpu.memory_space<vmem>>, vector<256x64xbf16>
    %cst_9 = arith.constant dense<0.000000e+00> : vector<16x64xf32>
    %11 = tpu.matmul %9, %10, %cst_9 {dimension_numbers = #tpu.dot_dimension_numbers<[1], [0], [0], [1], [0, 0, 1, 1], [], []>} : vector<16x256xbf16>, vector<256x64xbf16>, vector<16x64xf32> -> vector<16x64xf32>
    %c0_10 = arith.constant 0 : index
    %c0_11 = arith.constant 0 : index
    %12 = vector.load %arg6[%c0_10, %c0_11] : memref<1x64xf32, #tpu.memory_space<vmem>>, vector<1x64xf32>
    %13 = vector.broadcast %12 : vector<1x64xf32> to vector<16x64xf32>
    %14 = arith.addf %11, %13 : vector<16x64xf32>
    %c0_12 = arith.constant 0 : index
    %c0_13 = arith.constant 0 : index
    %15 = vector.load %arg7[%c0_12, %c0_13] : memref<256x64xbf16, #tpu.memory_space<vmem>>, vector<256x64xbf16>
    %cst_14 = arith.constant dense<0.000000e+00> : vector<16x64xf32>
    %16 = tpu.matmul %9, %15, %cst_14 {dimension_numbers = #tpu.dot_dimension_numbers<[1], [0], [0], [1], [0, 0, 1, 1], [], []>} : vector<16x256xbf16>, vector<256x64xbf16>, vector<16x64xf32> -> vector<16x64xf32>
    %c0_15 = arith.constant 0 : index
    %c0_16 = arith.constant 0 : index
    %17 = vector.load %arg8[%c0_15, %c0_16] : memref<1x64xf32, #tpu.memory_space<vmem>>, vector<1x64xf32>
    %18 = vector.broadcast %17 : vector<1x64xf32> to vector<16x64xf32>
    %19 = arith.addf %16, %18 : vector<16x64xf32>
    %20 = math.exp %19 : vector<16x64xf32>
    %21 = arith.mulf %20, %2 : vector<16x64xf32>
    %22 = arith.addf %14, %21 : vector<16x64xf32>
    %23 = arith.truncf %22 : vector<16x64xf32> to vector<16x64xbf16>
    %c0_17 = arith.constant 0 : index
    %c0_18 = arith.constant 0 : index
    %24 = vector.load %arg9[%c0_17, %c0_18] : memref<64x256xbf16, #tpu.memory_space<vmem>>, vector<64x256xbf16>
    %cst_19 = arith.constant dense<0.000000e+00> : vector<16x256xf32>
    %25 = tpu.matmul %23, %24, %cst_19 {dimension_numbers = #tpu.dot_dimension_numbers<[1], [0], [0], [1], [0, 0, 1, 1], [], []>} : vector<16x64xbf16>, vector<64x256xbf16>, vector<16x256xf32> -> vector<16x256xf32>
    %c0_20 = arith.constant 0 : index
    %c0_21 = arith.constant 0 : index
    %26 = vector.load %arg10[%c0_20, %c0_21] : memref<1x256xf32, #tpu.memory_space<vmem>>, vector<1x256xf32>
    %27 = vector.broadcast %26 : vector<1x256xf32> to vector<16x256xf32>
    %28 = arith.addf %25, %27 : vector<16x256xf32>
    %29 = math.tanh %28 : vector<16x256xf32>
    %30 = arith.truncf %29 : vector<16x256xf32> to vector<16x256xbf16>
    %c0_22 = arith.constant 0 : index
    %c0_23 = arith.constant 0 : index
    %31 = vector.load %arg11[%c0_22, %c0_23] : memref<256x128xbf16, #tpu.memory_space<vmem>>, vector<256x128xbf16>
    %cst_24 = arith.constant dense<0.000000e+00> : vector<16x128xf32>
    %32 = tpu.matmul %30, %31, %cst_24 {dimension_numbers = #tpu.dot_dimension_numbers<[1], [0], [0], [1], [0, 0, 1, 1], [], []>} : vector<16x256xbf16>, vector<256x128xbf16>, vector<16x128xf32> -> vector<16x128xf32>
    %c0_25 = arith.constant 0 : index
    %c0_26 = arith.constant 0 : index
    %33 = vector.load %arg12[%c0_25, %c0_26] : memref<1x128xf32, #tpu.memory_space<vmem>>, vector<1x128xf32>
    %34 = vector.broadcast %33 : vector<1x128xf32> to vector<16x128xf32>
    %35 = arith.addf %32, %34 : vector<16x128xf32>
    %c0_27 = arith.constant 0 : index
    %c0_28 = arith.constant 0 : index
    %36 = vector.load %arg13[%c0_27, %c0_28] : memref<256x128xbf16, #tpu.memory_space<vmem>>, vector<256x128xbf16>
    %cst_29 = arith.constant dense<0.000000e+00> : vector<16x128xf32>
    %37 = tpu.matmul %30, %36, %cst_29 {dimension_numbers = #tpu.dot_dimension_numbers<[1], [0], [0], [1], [0, 0, 1, 1], [], []>} : vector<16x256xbf16>, vector<256x128xbf16>, vector<16x128xf32> -> vector<16x128xf32>
    %c0_30 = arith.constant 0 : index
    %c0_31 = arith.constant 0 : index
    %38 = vector.load %arg14[%c0_30, %c0_31] : memref<1x128xf32, #tpu.memory_space<vmem>>, vector<1x128xf32>
    %39 = vector.broadcast %38 : vector<1x128xf32> to vector<16x128xf32>
    %40 = arith.addf %37, %39 : vector<16x128xf32>
    %cst_32 = arith.constant 5.000000e-01 : f32
    %41 = vector.broadcast %cst_32 : f32 to vector<16x128xf32>
    %42 = arith.mulf %41, %35 : vector<16x128xf32>
    %43 = math.tanh %42 : vector<16x128xf32>
    %cst_33 = arith.constant 1.000000e+00 : f32
    %44 = vector.broadcast %cst_33 : f32 to vector<16x128xf32>
    %45 = arith.addf %43, %44 : vector<16x128xf32>
    %cst_34 = arith.constant 5.000000e-01 : f32
    %46 = vector.broadcast %cst_34 : f32 to vector<16x128xf32>
    %47 = arith.mulf %46, %45 : vector<16x128xf32>
    %48 = arith.truncf %47 : vector<16x128xf32> to vector<16x128xbf16>
    %c0_35 = arith.constant 0 : index
    %c0_36 = arith.constant 0 : index
    %49 = vector.load %arg15[%c0_35, %c0_36] : memref<16x128xbf16, #tpu.memory_space<vmem>>, vector<16x128xbf16>
    tpu.vector_store %arg15[%c0_35, %c0_36], %48 {strides = array<i32>} : memref<16x128xbf16, #tpu.memory_space<vmem>>, vector<16x128xbf16>,
    %50 = arith.truncf %40 : vector<16x128xf32> to vector<16x128xbf16>
    %c0_37 = arith.constant 0 : index
    %c0_38 = arith.constant 0 : index
    %51 = vector.load %arg16[%c0_37, %c0_38] : memref<16x128xbf16, #tpu.memory_space<vmem>>, vector<16x128xbf16>
    tpu.vector_store %arg16[%c0_37, %c0_38], %50 {strides = array<i32>} : memref<16x128xbf16, #tpu.memory_space<vmem>>, vector<16x128xbf16>,
    %c0_39 = arith.constant 0 : index
    %c0_40 = arith.constant 0 : index
    %52 = vector.load %arg17[%c0_39, %c0_40] : memref<16x64xf32, #tpu.memory_space<vmem>>, vector<16x64xf32>
    tpu.vector_store %arg17[%c0_39, %c0_40], %14 {strides = array<i32>} : memref<16x64xf32, #tpu.memory_space<vmem>>, vector<16x64xf32>,
    %c0_41 = arith.constant 0 : index
    %c0_42 = arith.constant 0 : index
    %53 = vector.load %arg18[%c0_41, %c0_42] : memref<16x64xf32, #tpu.memory_space<vmem>>, vector<16x64xf32>
    tpu.vector_store %arg18[%c0_41, %c0_42], %19 {strides = array<i32>} : memref<16x64xf32, #tpu.memory_space<vmem>>, vector<16x64xf32>,
    return
  }
  func.func @transform_0(%arg0: i32) -> (i32, i32) {
    %c0_i32 = arith.constant 0 : i32
    %c0_i32_0 = arith.constant 0 : i32
    return %arg0, %c0_i32 : i32, i32
  }
  func.func @transform_1(%arg0: i32) -> (i32, i32) {
    %c0_i32 = arith.constant 0 : i32
    %c0_i32_0 = arith.constant 0 : i32
    return %arg0, %c0_i32 : i32, i32
  }
  func.func @transform_2(%arg0: i32) -> (i32, i32) {
    %c0_i32 = arith.constant 0 : i32
    %c0_i32_0 = arith.constant 0 : i32
    %c0_i32_1 = arith.constant 0 : i32
    return %c0_i32, %c0_i32_0 : i32, i32
  }
  func.func @transform_3(%arg0: i32) -> (i32, i32) {
    %c0_i32 = arith.constant 0 : i32
    %c0_i32_0 = arith.constant 0 : i32
    %c0_i32_1 = arith.constant 0 : i32
    return %c0_i32, %c0_i32_0 : i32, i32
  }
  func.func @transform_4(%arg0: i32) -> (i32, i32) {
    %c0_i32 = arith.constant 0 : i32
    %c0_i32_0 = arith.constant 0 : i32
    %c0_i32_1 = arith.constant 0 : i32
    return %c0_i32, %c0_i32_0 : i32, i32
  }
  func.func @transform_5(%arg0: i32) -> (i32, i32) {
    %c0_i32 = arith.constant 0 : i32
    %c0_i32_0 = arith.constant 0 : i32
    %c0_i32_1 = arith.constant 0 : i32
    return %c0_i32, %c0_i32_0 : i32, i32
  }
  func.func @transform_6(%arg0: i32) -> (i32, i32) {
    %c0_i32 = arith.constant 0 : i32
    %c0_i32_0 = arith.constant 0 : i32
    %c0_i32_1 = arith.constant 0 : i32
    return %c0_i32, %c0_i32_0 : i32, i32
  }
  func.func @transform_7(%arg0: i32) -> (i32, i32) {
    %c0_i32 = arith.constant 0 : i32
    %c0_i32_0 = arith.constant 0 : i32
    %c0_i32_1 = arith.constant 0 : i32
    return %c0_i32, %c0_i32_0 : i32, i32
  }
  func.func @transform_8(%arg0: i32) -> (i32, i32) {
    %c0_i32 = arith.constant 0 : i32
    %c0_i32_0 = arith.constant 0 : i32
    %c0_i32_1 = arith.constant 0 : i32
    return %c0_i32, %c0_i32_0 : i32, i32
  }
  func.func @transform_9(%arg0: i32) -> (i32, i32) {
    %c0_i32 = arith.constant 0 : i32
    %c0_i32_0 = arith.constant 0 : i32
    %c0_i32_1 = arith.constant 0 : i32
    return %c0_i32, %c0_i32_0 : i32, i32
  }
  func.func @transform_10(%arg0: i32) -> (i32, i32) {
    %c0_i32 = arith.constant 0 : i32
    %c0_i32_0 = arith.constant 0 : i32
    %c0_i32_1 = arith.constant 0 : i32
    return %c0_i32, %c0_i32_0 : i32, i32
  }
  func.func @transform_11(%arg0: i32) -> (i32, i32) {
    %c0_i32 = arith.constant 0 : i32
    %c0_i32_0 = arith.constant 0 : i32
    %c0_i32_1 = arith.constant 0 : i32
    return %c0_i32, %c0_i32_0 : i32, i32
  }
  func.func @transform_12(%arg0: i32) -> (i32, i32) {
    %c0_i32 = arith.constant 0 : i32
    %c0_i32_0 = arith.constant 0 : i32
    %c0_i32_1 = arith.constant 0 : i32
    return %c0_i32, %c0_i32_0 : i32, i32
  }
  func.func @transform_13(%arg0: i32) -> (i32, i32) {
    %c0_i32 = arith.constant 0 : i32
    %c0_i32_0 = arith.constant 0 : i32
    %c0_i32_1 = arith.constant 0 : i32
    return %c0_i32, %c0_i32_0 : i32, i32
  }
  func.func @transform_14(%arg0: i32) -> (i32, i32) {
    %c0_i32 = arith.constant 0 : i32
    %c0_i32_0 = arith.constant 0 : i32
    return %arg0, %c0_i32 : i32, i32
  }
  func.func @transform_15(%arg0: i32) -> (i32, i32) {
    %c0_i32 = arith.constant 0 : i32
    %c0_i32_0 = arith.constant 0 : i32
    return %arg0, %c0_i32 : i32, i32
  }
  func.func @transform_16(%arg0: i32) -> (i32, i32) {
    %c0_i32 = arith.constant 0 : i32
    %c0_i32_0 = arith.constant 0 : i32
    return %arg0, %c0_i32 : i32, i32
  }
  func.func @transform_17(%arg0: i32) -> (i32, i32) {
    %c0_i32 = arith.constant 0 : i32
    %c0_i32_0 = arith.constant 0 : i32
    return %arg0, %c0_i32 : i32, i32
  }
}

</mosaic_0001>

<llo_original>
// kernel: tpu_custom_call.1
$region0: #{tpu_custom_call.1}
  #allocation0 [shape = 'u32[]', space=smem, size = 0x4, offset = 0x4, fixed_abs, tag = 'smem constant byte address 0x4 - core index']
  #allocation1 [shape = 'u32[144,128]{1,0:T(1,128)}', space=vmem, size = 0x12000, scoped, tag = 'internal scratch']
  %s0 = inlined_call_operand.hbm [shape: f32[16,128], index: 0, kind: input, shape index: {}]
  %s1 = inlined_call_operand.hbm [shape: f32[16,64], index: 1, kind: input, shape index: {}]
  %s2 = inlined_call_operand.vmem [shape: bf16[128,256], index: 2, kind: input, shape index: {}]
  %s3 = inlined_call_operand.vmem [shape: f32[1,256], index: 3, kind: input, shape index: {}]
  %s4 = inlined_call_operand.vmem [shape: bf16[256,64], index: 4, kind: input, shape index: {}]
  %s5 = inlined_call_operand.vmem [shape: f32[1,64], index: 5, kind: input, shape index: {}]
  %s6 = inlined_call_operand.vmem [shape: bf16[256,64], index: 6, kind: input, shape index: {}]
  %s7 = inlined_call_operand.vmem [shape: f32[1,64], index: 7, kind: input, shape index: {}]
  %s8 = inlined_call_operand.hbm [shape: bf16[64,256], index: 8, kind: input, shape index: {}]
  %s9 = inlined_call_operand.vmem [shape: f32[1,256], index: 9, kind: input, shape index: {}]
  %s10 = inlined_call_operand.vmem [shape: bf16[256,128], index: 10, kind: input, shape index: {}]
  %s11 = inlined_call_operand.vmem [shape: f32[1,128], index: 11, kind: input, shape index: {}]
  %s12 = inlined_call_operand.vmem [shape: bf16[256,128], index: 12, kind: input, shape index: {}]
  %s13 = inlined_call_operand.vmem [shape: f32[1,128], index: 13, kind: input, shape index: {}]
  %s14 = inlined_call_operand.hbm [shape: bf16[16,128], index: 14, kind: output, shape index: {0}]
  %s15 = inlined_call_operand.hbm [shape: bf16[16,128], index: 15, kind: output, shape index: {1}]
  %s16 = inlined_call_operand.hbm [shape: f32[16,64], index: 16, kind: output, shape index: {2}]
  %s17 = inlined_call_operand.hbm [shape: f32[16,64], index: 17, kind: output, shape index: {3}]
  %18 = xla_tuple %s14, %s15, %s16, %s17
  %s19 = sld [smem:[#allocation0]]
  $region102: #{tpu_custom_call.1} parent=0
    _
  %s21 = ssub.s32 1, %s19
  %s22 = scalar_select 0, %s21, %s19
  $region1: #{tpu_custom_call.1} parent=0
    #allocation2 [shape = 'u8[8192]{0}', space=vmem, size = 0x2000, scoped, tag = 'input window, operand 0, single buffered']
    #allocation3 [shape = 's32[1]{0}', space=sflag, size = 0x4, scoped, tag = 'scoped memory for tpu_custom_call.1']
    #allocation4 [shape = 's32[1]{0}', space=sflag, size = 0x4, scoped, tag = 'scoped memory for tpu_custom_call.1']
    #allocation5 [shape = 'u8[8192]{0}', space=vmem, size = 0x2000, scoped, tag = 'input window, operand 1, single buffered']
    #allocation6 [shape = 's32[1]{0}', space=sflag, size = 0x4, scoped, tag = 'scoped memory for tpu_custom_call.1']
    #allocation7 [shape = 'u8[32768]{0}', space=vmem, size = 0x8000, scoped, tag = 'input window, operand 8, single buffered']
    #allocation8 [shape = 'u8[4096]{0}', space=vmem, size = 0x1000, scoped, tag = 'output window, operand 0, single buffered']
    #allocation9 [shape = 'u8[4096]{0}', space=vmem, size = 0x1000, scoped, tag = 'output window, operand 1, single buffered']
    #allocation10 [shape = 's32[1]{0}', space=sflag, size = 0x4, scoped, tag = 'scoped memory for tpu_custom_call.1']
    #allocation11 [shape = 'u8[8192]{0}', space=vmem, size = 0x2000, scoped, tag = 'output window, operand 2, single buffered']
    #allocation12 [shape = 'u8[8192]{0}', space=vmem, size = 0x2000, scoped, tag = 'output window, operand 3, single buffered']
    #allocation13 [shape = 's32[1]{0}', space=sflag, size = 0x4, scoped, tag = 'scoped memory for tpu_custom_call.1']
    %23 = vsyncpa [#allocation3], 0
    %24 = vsyncpa [#allocation6], 0
    %25 = vsyncpa [#allocation4], 0
    %26 = vsyncpa [#allocation10], 0
    %27 = vsyncpa [#allocation13], 0
    // Predicated region
    $region2: #{tpu_custom_call.1} parent=1 // pred_check
      _
    $region3: #{tpu_custom_call.1} parent=1 // pred_check_branch
      %29 = sbr.rel (0) target = $region5
    $region4: #{tpu_custom_call.1} parent=1 // pred_region
      %s31 = ssub.s32 256, 256
      %32 = vsyncadd [#allocation3], %s31
      %s33 = sshll.u32 [#allocation2], 4
      %s34 = int_to_ptr.vmem [resolvable:$true] %s33
      %39 = dma.hbm_to_vmem [thread:$0]  %s0, 256, %s34, [#allocation3], 128, 128, 8
    $region5: #{tpu_custom_call.1} parent=1 // pred_fallthru
      _
    // Predicated region
    $region6: #{tpu_custom_call.1} parent=1 // pred_check
      _
    $region7: #{tpu_custom_call.1} parent=1 // pred_check_branch
      %41 = sbr.rel (0) target = $region9
    $region8: #{tpu_custom_call.1} parent=1 // pred_region
      %s43 = ssub.s32 256, 256
      %44 = vsyncadd [#allocation6], %s43
      %s45 = sshll.u32 [#allocation5], 4
      %s46 = int_to_ptr.vmem [resolvable:$true] %s45
      %51 = dma.hbm_to_vmem [thread:$0]  %s1, 256, %s46, [#allocation6], 128, 128, 8
    $region9: #{tpu_custom_call.1} parent=1 // pred_fallthru
      _
    // Predicated region
    $region10: #{tpu_custom_call.1} parent=1 // pred_check
      _
    $region11: #{tpu_custom_call.1} parent=1 // pred_check_branch
      %53 = sbr.rel (0) target = $region13
    $region12: #{tpu_custom_call.1} parent=1 // pred_region
      _
    $region13: #{tpu_custom_call.1} parent=1 // pred_fallthru
      _
    // Predicated region
    $region14: #{tpu_custom_call.1} parent=1 // pred_check
      _
    $region15: #{tpu_custom_call.1} parent=1 // pred_check_branch
      %55 = sbr.rel (0) target = $region17
    $region16: #{tpu_custom_call.1} parent=1 // pred_region
      _
    $region17: #{tpu_custom_call.1} parent=1 // pred_fallthru
      _
    // Predicated region
    $region18: #{tpu_custom_call.1} parent=1 // pred_check
      _
    $region19: #{tpu_custom_call.1} parent=1 // pred_check_branch
      %57 = sbr.rel (0) target = $region21
    $region20: #{tpu_custom_call.1} parent=1 // pred_region
      _
    $region21: #{tpu_custom_call.1} parent=1 // pred_fallthru
      _
    // Predicated region
    $region22: #{tpu_custom_call.1} parent=1 // pred_check
      _
    $region23: #{tpu_custom_call.1} parent=1 // pred_check_branch
      %59 = sbr.rel (0) target = $region25
    $region24: #{tpu_custom_call.1} parent=1 // pred_region
      _
    $region25: #{tpu_custom_call.1} parent=1 // pred_fallthru
      _
    // Predicated region
    $region26: #{tpu_custom_call.1} parent=1 // pred_check
      _
    $region27: #{tpu_custom_call.1} parent=1 // pred_check_branch
      %61 = sbr.rel (0) target = $region29
    $region28: #{tpu_custom_call.1} parent=1 // pred_region
      _
    $region29: #{tpu_custom_call.1} parent=1 // pred_fallthru
      _
    // Predicated region
    $region30: #{tpu_custom_call.1} parent=1 // pred_check
      _
    $region31: #{tpu_custom_call.1} parent=1 // pred_check_branch
      %63 = sbr.rel (0) target = $region33
    $region32: #{tpu_custom_call.1} parent=1 // pred_region
      _
    $region33: #{tpu_custom_call.1} parent=1 // pred_fallthru
      _
    // Predicated region
    $region34: #{tpu_custom_call.1} parent=1 // pred_check
      _
    $region35: #{tpu_custom_call.1} parent=1 // pred_check_branch
      %65 = sbr.rel (0) target = $region37
    $region36: #{tpu_custom_call.1} parent=1 // pred_region
      %s67 = ssub.s32 1024, 1024
      %68 = vsyncadd [#allocation6], %s67
      %s69 = sshll.u32 [#allocation7], 4
      %s70 = int_to_ptr.vmem [resolvable:$true] %s69
      %75 = dma.hbm_to_vmem [thread:$0]  %s8, 1024, %s70, [#allocation6], 128, 128, 8
    $region37: #{tpu_custom_call.1} parent=1 // pred_fallthru
      _
    // Predicated region
    $region38: #{tpu_custom_call.1} parent=1 // pred_check
      _
    $region39: #{tpu_custom_call.1} parent=1 // pred_check_branch
      %77 = sbr.rel (0) target = $region41
    $region40: #{tpu_custom_call.1} parent=1 // pred_region
      _
    $region41: #{tpu_custom_call.1} parent=1 // pred_fallthru
      _
    // Predicated region
    $region42: #{tpu_custom_call.1} parent=1 // pred_check
      _
    $region43: #{tpu_custom_call.1} parent=1 // pred_check_branch
      %79 = sbr.rel (0) target = $region45
    $region44: #{tpu_custom_call.1} parent=1 // pred_region
      _
    $region45: #{tpu_custom_call.1} parent=1 // pred_fallthru
      _
    // Predicated region
    $region46: #{tpu_custom_call.1} parent=1 // pred_check
      _
    $region47: #{tpu_custom_call.1} parent=1 // pred_check_branch
      %81 = sbr.rel (0) target = $region49
    $region48: #{tpu_custom_call.1} parent=1 // pred_region
      _
    $region49: #{tpu_custom_call.1} parent=1 // pred_fallthru
      _
    // Predicated region
    $region50: #{tpu_custom_call.1} parent=1 // pred_check
      _
    $region51: #{tpu_custom_call.1} parent=1 // pred_check_branch
      %83 = sbr.rel (0) target = $region53
    $region52: #{tpu_custom_call.1} parent=1 // pred_region
      _
    $region53: #{tpu_custom_call.1} parent=1 // pred_fallthru
      _
    // Predicated region
    $region54: #{tpu_custom_call.1} parent=1 // pred_check
      _
    $region55: #{tpu_custom_call.1} parent=1 // pred_check_branch
      %85 = sbr.rel (0) target = $region57
    $region56: #{tpu_custom_call.1} parent=1 // pred_region
      _
    $region57: #{tpu_custom_call.1} parent=1 // pred_fallthru
      _
    // Predicated region
    $region58: #{tpu_custom_call.1} parent=1 // pred_check
      _
    $region59: #{tpu_custom_call.1} parent=1 // pred_check_branch
      %87 = sbr.rel (0) target = $region61
    $region60: #{tpu_custom_call.1} parent=1 // pred_region
      %88 = dma.done [#allocation3], 256
    $region61: #{tpu_custom_call.1} parent=1 // pred_fallthru
      _
    // Predicated region
    $region62: #{tpu_custom_call.1} parent=1 // pred_check
      _
    $region63: #{tpu_custom_call.1} parent=1 // pred_check_branch
      %90 = sbr.rel (0) target = $region65
    $region64: #{tpu_custom_call.1} parent=1 // pred_region
      %91 = dma.done [#allocation6], 256
    $region65: #{tpu_custom_call.1} parent=1 // pred_fallthru
      _
    // Predicated region
    $region66: #{tpu_custom_call.1} parent=1 // pred_check
      _
    $region67: #{tpu_custom_call.1} parent=1 // pred_check_branch
      %93 = sbr.rel (0) target = $region69
    $region68: #{tpu_custom_call.1} parent=1 // pred_region
      %94 = dma.done [#allocation6], 1024
    $region69: #{tpu_custom_call.1} parent=1 // pred_fallthru
      _
    %v96 = vld [vmem:[#allocation2] sm:$0xff]
    %v97 = vld [vmem:[#allocation2 + $0x8] sm:$0xff]
    %v98 = vpack.c.bf16 %v97, %v96
    %v99 = vld [vmem:[#allocation5] sm:$0xff]
    %v100 = vld [vmem:[#allocation5 + $0x8] sm:$0xff]
    %v101 = vld [vmem:[%s2] sm:$0xff]
    %v102 = vld [vmem:[%s2 + $0x8] sm:$0xff]
    %v103 = vld [vmem:[%s2 + $0x10] sm:$0xff]
    %v104 = vld [vmem:[%s2 + $0x18] sm:$0xff]
    %v105 = vld [vmem:[%s2 + $0x20] sm:$0xff]
    %v106 = vld [vmem:[%s2 + $0x28] sm:$0xff]
    %v107 = vld [vmem:[%s2 + $0x30] sm:$0xff]
    %v108 = vld [vmem:[%s2 + $0x38] sm:$0xff]
    %v109 = vld [vmem:[%s2 + $0x40] sm:$0xff]
    %v110 = vld [vmem:[%s2 + $0x48] sm:$0xff]
    %v111 = vld [vmem:[%s2 + $0x50] sm:$0xff]
    %v112 = vld [vmem:[%s2 + $0x58] sm:$0xff]
    %v113 = vld [vmem:[%s2 + $0x60] sm:$0xff]
    %v114 = vld [vmem:[%s2 + $0x68] sm:$0xff]
    %v115 = vld [vmem:[%s2 + $0x70] sm:$0xff]
    %v116 = vld [vmem:[%s2 + $0x78] sm:$0xff]
    %v117 = vld [vmem:[%s3] sm:$0x3]
    %v119 = vlaneseq
    %v120 = vshrl.u32 %v119, 7
    %v121 = vsub.s32 0, %v120
    %v122 = vrot.slane %v117, %v121
    %v123 = vlaneseq
    %v124 = vshrl.u32 %v123, 7
    %v125 = vsub.s32 1, %v124
    %v126 = vrot.slane %v117, %v125
    %v145 = vunpack.c.l.b16 %v101
    %v146 = vunpack.c.h.b16 %v101
    %v147 = vunpack.c.l.b16 %v102
    %v148 = vunpack.c.h.b16 %v102
    %v149 = vunpack.c.l.b16 %v103
    %v150 = vunpack.c.h.b16 %v103
    %v151 = vunpack.c.l.b16 %v104
    %v152 = vunpack.c.h.b16 %v104
    %v153 = vunpack.c.l.b16 %v105
    %v154 = vunpack.c.h.b16 %v105
    %v155 = vunpack.c.l.b16 %v106
    %v156 = vunpack.c.h.b16 %v106
    %v157 = vunpack.c.l.b16 %v107
    %v158 = vunpack.c.h.b16 %v107
    %v159 = vunpack.c.l.b16 %v108
    %v160 = vunpack.c.h.b16 %v108
    %v161 = vunpack.c.l.b16 %v109
    %v162 = vunpack.c.h.b16 %v109
    %v163 = vunpack.c.l.b16 %v110
    %v164 = vunpack.c.h.b16 %v110
    %v165 = vunpack.c.l.b16 %v111
    %v166 = vunpack.c.h.b16 %v111
    %v167 = vunpack.c.l.b16 %v112
    %v168 = vunpack.c.h.b16 %v112
    %v169 = vunpack.c.l.b16 %v113
    %v170 = vunpack.c.h.b16 %v113
    %v171 = vunpack.c.l.b16 %v114
    %v172 = vunpack.c.h.b16 %v114
    %v173 = vunpack.c.l.b16 %v115
    %v174 = vunpack.c.h.b16 %v115
    %v175 = vunpack.c.l.b16 %v116
    %v176 = vunpack.c.h.b16 %v116
    %v177 = vpack.c.b16 %v147, %v145
    %v178 = vpack.c.b16 %v148, %v146
    %v179 = vpack.c.b16 %v151, %v149
    %v180 = vpack.c.b16 %v152, %v150
    %v181 = vpack.c.b16 %v155, %v153
    %v182 = vpack.c.b16 %v156, %v154
    %v183 = vpack.c.b16 %v159, %v157
    %v184 = vpack.c.b16 %v160, %v158
    %v185 = vpack.c.b16 %v163, %v161
    %v186 = vpack.c.b16 %v164, %v162
    %v187 = vpack.c.b16 %v167, %v165
    %v188 = vpack.c.b16 %v168, %v166
    %v189 = vpack.c.b16 %v171, %v169
    %v190 = vpack.c.b16 %v172, %v170
    %v191 = vpack.c.b16 %v175, %v173
    %v192 = vpack.c.b16 %v176, %v174
    %209 = vmatprep.subr.bf16.mxu0 %v192
    %210 = vmatpush1.bf16.msra.mxu0 %v191
    %211 = vmatprep.subr.bf16.mxu0 %v190
    %212 = vmatpush1.bf16.msra.mxu0 %v189
    %213 = vmatprep.subr.bf16.mxu0 %v188
    %214 = vmatpush1.bf16.msra.mxu0 %v187
    %215 = vmatprep.subr.bf16.mxu0 %v186
    %216 = vmatpush1.bf16.msra.mxu0 %v185
    %217 = vmatprep.subr.bf16.mxu0 %v184
    %218 = vmatpush1.bf16.msra.mxu0 %v183
    %219 = vmatprep.subr.bf16.mxu0 %v182
    %220 = vmatpush1.bf16.msra.mxu0 %v181
    %221 = vmatprep.subr.bf16.mxu0 %v180
    %222 = vmatpush1.bf16.msra.mxu0 %v179
    %223 = vmatprep.subr.bf16.mxu0 %v178
    %224 = vmatpush1.bf16.msra.mxu0 %v177
    %225 = vmatprep.subr.bf16.mxu0 0
    %226 = vmatpush2.bf16.msra.mxu0 0
    %227 = vmatprep.subr.bf16.mxu0 0
    %228 = vmatpush2.bf16.msra.mxu0 0
    %229 = vmatprep.subr.bf16.mxu0 0
    %230 = vmatpush2.bf16.msra.mxu0 0
    %231 = vmatprep.subr.bf16.mxu0 0
    %232 = vmatpush2.bf16.msra.mxu0 0
    %233 = vmatprep.subr.bf16.mxu0 0
    %234 = vmatpush2.bf16.msra.mxu0 0
    %235 = vmatprep.subr.bf16.mxu0 0
    %236 = vmatpush2.bf16.msra.mxu0 0
    %237 = vmatprep.subr.bf16.mxu0 0
    %238 = vmatpush2.bf16.msra.mxu0 0
    %239 = vmatprep.subr.bf16.mxu0 0
    %240 = vmatpush2.bf16.msra.mxu0 0
    %241 = vmatprep.mubr.bf16.mxu0 0
    %242 = vmatmul.mubr.bf16.gmra.mxu0 %v98
    %v243 = vpop.f32.mrf.mxu0
    %v244 = vadd.f32 %v122, %v243
    %v245 = vpop.f32.mrf.mxu0
    %v246 = vadd.f32 %v126, %v245
    %v247 = vpop.f32.mrf.mxu0
    %v248 = vadd.f32 %v122, %v247
    %v249 = vpop.f32.mrf.mxu0
    %v250 = vadd.f32 %v126, %v249
    %251 = vdwg.mxu0
    %v252 = vtanh.pop %v244
    %v253 = vtanh.pop %v246
    %v254 = vtanh.pop %v248
    %v255 = vtanh.pop %v250
    %v256 = vpack.c.bf16 %v254, %v252
    %v257 = vpack.c.bf16 %v255, %v253
    %v258 = vld [vmem:[%s4] sm:$0xf]
    %v259 = vld [vmem:[%s4 + $0x4] sm:$0xf]
    %v260 = vld [vmem:[%s4 + $0x8] sm:$0xf]
    %v261 = vld [vmem:[%s4 + $0xc] sm:$0xf]
    %v262 = vld [vmem:[%s4 + $0x10] sm:$0xf]
    %v263 = vld [vmem:[%s4 + $0x14] sm:$0xf]
    %v264 = vld [vmem:[%s4 + $0x18] sm:$0xf]
    %v265 = vld [vmem:[%s4 + $0x1c] sm:$0xf]
    %v266 = vld [vmem:[%s4 + $0x20] sm:$0xf]
    %v267 = vld [vmem:[%s4 + $0x24] sm:$0xf]
    %v268 = vld [vmem:[%s4 + $0x28] sm:$0xf]
    %v269 = vld [vmem:[%s4 + $0x2c] sm:$0xf]
    %v270 = vld [vmem:[%s4 + $0x30] sm:$0xf]
    %v271 = vld [vmem:[%s4 + $0x34] sm:$0xf]
    %v272 = vld [vmem:[%s4 + $0x38] sm:$0xf]
    %v273 = vld [vmem:[%s4 + $0x3c] sm:$0xf]
    %v274 = vld [vmem:[%s4 + $0x40] sm:$0xf]
    %v275 = vld [vmem:[%s4 + $0x44] sm:$0xf]
    %v276 = vld [vmem:[%s4 + $0x48] sm:$0xf]
    %v277 = vld [vmem:[%s4 + $0x4c] sm:$0xf]
    %v278 = vld [vmem:[%s4 + $0x50] sm:$0xf]
    %v279 = vld [vmem:[%s4 + $0x54] sm:$0xf]
    %v280 = vld [vmem:[%s4 + $0x58] sm:$0xf]
    %v281 = vld [vmem:[%s4 + $0x5c] sm:$0xf]
    %v282 = vld [vmem:[%s4 + $0x60] sm:$0xf]
    %v283 = vld [vmem:[%s4 + $0x64] sm:$0xf]
    %v284 = vld [vmem:[%s4 + $0x68] sm:$0xf]
    %v285 = vld [vmem:[%s4 + $0x6c] sm:$0xf]
    %v286 = vld [vmem:[%s4 + $0x70] sm:$0xf]
    %v287 = vld [vmem:[%s4 + $0x74] sm:$0xf]
    %v288 = vld [vmem:[%s4 + $0x78] sm:$0xf]
    %v289 = vld [vmem:[%s4 + $0x7c] sm:$0xf]
    %v290 = vld [vmem:[%s5] sm:$0x1]
    %v292 = vlaneseq
    %v293 = vshrl.u32 %v292, 7
    %v294 = vsub.s32 0, %v293
    %v295 = vrot.slane %v290, %v294
    %v329 = vunpack.c.l.b16 %v258
    %v330 = vunpack.c.l.b16 %v259
    %v331 = vunpack.c.l.b16 %v260
    %v332 = vunpack.c.l.b16 %v261
    %v333 = vunpack.c.l.b16 %v262
    %v334 = vunpack.c.l.b16 %v263
    %v335 = vunpack.c.l.b16 %v264
    %v336 = vunpack.c.l.b16 %v265
    %v337 = vunpack.c.l.b16 %v266
    %v338 = vunpack.c.l.b16 %v267
    %v339 = vunpack.c.l.b16 %v268
    %v340 = vunpack.c.l.b16 %v269
    %v341 = vunpack.c.l.b16 %v270
    %v342 = vunpack.c.l.b16 %v271
    %v343 = vunpack.c.l.b16 %v272
    %v344 = vunpack.c.l.b16 %v273
    %v345 = vunpack.c.l.b16 %v274
    %v346 = vunpack.c.l.b16 %v275
    %v347 = vunpack.c.l.b16 %v276
    %v348 = vunpack.c.l.b16 %v277
    %v349 = vunpack.c.l.b16 %v278
    %v350 = vunpack.c.l.b16 %v279
    %v351 = vunpack.c.l.b16 %v280
    %v352 = vunpack.c.l.b16 %v281
    %v353 = vunpack.c.l.b16 %v282
    %v354 = vunpack.c.l.b16 %v283
    %v355 = vunpack.c.l.b16 %v284
    %v356 = vunpack.c.l.b16 %v285
    %v357 = vunpack.c.l.b16 %v286
    %v358 = vunpack.c.l.b16 %v287
    %v359 = vunpack.c.l.b16 %v288
    %v360 = vunpack.c.l.b16 %v289
    %v361 = vpack.c.b16 %v330, %v329
    %v362 = vpack.c.b16 %v332, %v331
    %v363 = vpack.c.b16 %v334, %v333
    %v364 = vpack.c.b16 %v336, %v335
    %v365 = vpack.c.b16 %v338, %v337
    %v366 = vpack.c.b16 %v340, %v339
    %v367 = vpack.c.b16 %v342, %v341
    %v368 = vpack.c.b16 %v344, %v343
    %v369 = vpack.c.b16 %v346, %v345
    %v370 = vpack.c.b16 %v348, %v347
    %v371 = vpack.c.b16 %v350, %v349
    %v372 = vpack.c.b16 %v352, %v351
    %v373 = vpack.c.b16 %v354, %v353
    %v374 = vpack.c.b16 %v356, %v355
    %v375 = vpack.c.b16 %v358, %v357
    %v376 = vpack.c.b16 %v360, %v359
    %393 = vmatprep.subr.bf16.mxu0 0
    %394 = vmatpush1.bf16.msra.mxu0 %v368
    %395 = vmatprep.subr.bf16.mxu0 0
    %396 = vmatpush1.bf16.msra.mxu0 %v367
    %397 = vmatprep.subr.bf16.mxu0 0
    %398 = vmatpush1.bf16.msra.mxu0 %v366
    %399 = vmatprep.subr.bf16.mxu0 0
    %400 = vmatpush1.bf16.msra.mxu0 %v365
    %401 = vmatprep.subr.bf16.mxu0 0
    %402 = vmatpush1.bf16.msra.mxu0 %v364
    %403 = vmatprep.subr.bf16.mxu0 0
    %404 = vmatpush1.bf16.msra.mxu0 %v363
    %405 = vmatprep.subr.bf16.mxu0 0
    %406 = vmatpush1.bf16.msra.mxu0 %v362
    %407 = vmatprep.subr.bf16.mxu0 0
    %408 = vmatpush1.bf16.msra.mxu0 %v361
    %409 = vmatprep.subr.bf16.mxu0 0
    %410 = vmatpush2.bf16.msra.mxu0 %v376
    %411 = vmatprep.subr.bf16.mxu0 0
    %412 = vmatpush2.bf16.msra.mxu0 %v375
    %413 = vmatprep.subr.bf16.mxu0 0
    %414 = vmatpush2.bf16.msra.mxu0 %v374
    %415 = vmatprep.subr.bf16.mxu0 0
    %416 = vmatpush2.bf16.msra.mxu0 %v373
    %417 = vmatprep.subr.bf16.mxu0 0
    %418 = vmatpush2.bf16.msra.mxu0 %v372
    %419 = vmatprep.subr.bf16.mxu0 0
    %420 = vmatpush2.bf16.msra.mxu0 %v371
    %421 = vmatprep.subr.bf16.mxu0 0
    %422 = vmatpush2.bf16.msra.mxu0 %v370
    %423 = vmatprep.subr.bf16.mxu0 0
    %424 = vmatpush2.bf16.msra.mxu0 %v369
    %425 = vmatprep.mubr.bf16.mxu0 %v257
    %426 = vmatmul.mubr.bf16.gmra.mxu0 %v256
    %v427 = vpop.f32.mrf.mxu0
    %v428 = vadd.f32 %v295, %v427
    %v429 = vpop.f32.mrf.mxu0
    %v430 = vpop.f32.mrf.mxu0
    %v431 = vadd.f32 %v295, %v430
    %v432 = vpop.f32.mrf.mxu0
    %433 = vdwg.mxu0
    %v434 = vld [vmem:[%s6] sm:$0xf]
    %v435 = vld [vmem:[%s6 + $0x4] sm:$0xf]
    %v436 = vld [vmem:[%s6 + $0x8] sm:$0xf]
    %v437 = vld [vmem:[%s6 + $0xc] sm:$0xf]
    %v438 = vld [vmem:[%s6 + $0x10] sm:$0xf]
    %v439 = vld [vmem:[%s6 + $0x14] sm:$0xf]
    %v440 = vld [vmem:[%s6 + $0x18] sm:$0xf]
    %v441 = vld [vmem:[%s6 + $0x1c] sm:$0xf]
    %v442 = vld [vmem:[%s6 + $0x20] sm:$0xf]
    %v443 = vld [vmem:[%s6 + $0x24] sm:$0xf]
    %v444 = vld [vmem:[%s6 + $0x28] sm:$0xf]
    %v445 = vld [vmem:[%s6 + $0x2c] sm:$0xf]
    %v446 = vld [vmem:[%s6 + $0x30] sm:$0xf]
    %v447 = vld [vmem:[%s6 + $0x34] sm:$0xf]
    %v448 = vld [vmem:[%s6 + $0x38] sm:$0xf]
    %v449 = vld [vmem:[%s6 + $0x3c] sm:$0xf]
    %v450 = vld [vmem:[%s6 + $0x40] sm:$0xf]
    %v451 = vld [vmem:[%s6 + $0x44] sm:$0xf]
    %v452 = vld [vmem:[%s6 + $0x48] sm:$0xf]
    %v453 = vld [vmem:[%s6 + $0x4c] sm:$0xf]
    %v454 = vld [vmem:[%s6 + $0x50] sm:$0xf]
    %v455 = vld [vmem:[%s6 + $0x54] sm:$0xf]
    %v456 = vld [vmem:[%s6 + $0x58] sm:$0xf]
    %v457 = vld [vmem:[%s6 + $0x5c] sm:$0xf]
    %v458 = vld [vmem:[%s6 + $0x60] sm:$0xf]
    %v459 = vld [vmem:[%s6 + $0x64] sm:$0xf]
    %v460 = vld [vmem:[%s6 + $0x68] sm:$0xf]
    %v461 = vld [vmem:[%s6 + $0x6c] sm:$0xf]
    %v462 = vld [vmem:[%s6 + $0x70] sm:$0xf]
    %v463 = vld [vmem:[%s6 + $0x74] sm:$0xf]
    %v464 = vld [vmem:[%s6 + $0x78] sm:$0xf]
    %v465 = vld [vmem:[%s6 + $0x7c] sm:$0xf]
    %v466 = vld [vmem:[%s7] sm:$0x1]
    %v468 = vlaneseq
    %v469 = vshrl.u32 %v468, 7
    %v470 = vsub.s32 0, %v469
    %v471 = vrot.slane %v466, %v470
    %v505 = vunpack.c.l.b16 %v434
    %v506 = vunpack.c.l.b16 %v435
    %v507 = vunpack.c.l.b16 %v436
    %v508 = vunpack.c.l.b16 %v437
    %v509 = vunpack.c.l.b16 %v438
    %v510 = vunpack.c.l.b16 %v439
    %v511 = vunpack.c.l.b16 %v440
    %v512 = vunpack.c.l.b16 %v441
    %v513 = vunpack.c.l.b16 %v442
    %v514 = vunpack.c.l.b16 %v443
    %v515 = vunpack.c.l.b16 %v444
    %v516 = vunpack.c.l.b16 %v445
    %v517 = vunpack.c.l.b16 %v446
    %v518 = vunpack.c.l.b16 %v447
    %v519 = vunpack.c.l.b16 %v448
    %v520 = vunpack.c.l.b16 %v449
    %v521 = vunpack.c.l.b16 %v450
    %v522 = vunpack.c.l.b16 %v451
    %v523 = vunpack.c.l.b16 %v452
    %v524 = vunpack.c.l.b16 %v453
    %v525 = vunpack.c.l.b16 %v454
    %v526 = vunpack.c.l.b16 %v455
    %v527 = vunpack.c.l.b16 %v456
    %v528 = vunpack.c.l.b16 %v457
    %v529 = vunpack.c.l.b16 %v458
    %v530 = vunpack.c.l.b16 %v459
    %v531 = vunpack.c.l.b16 %v460
    %v532 = vunpack.c.l.b16 %v461
    %v533 = vunpack.c.l.b16 %v462
    %v534 = vunpack.c.l.b16 %v463
    %v535 = vunpack.c.l.b16 %v464
    %v536 = vunpack.c.l.b16 %v465
    %v537 = vpack.c.b16 %v506, %v505
    %v538 = vpack.c.b16 %v508, %v507
    %v539 = vpack.c.b16 %v510, %v509
    %v540 = vpack.c.b16 %v512, %v511
    %v541 = vpack.c.b16 %v514, %v513
    %v542 = vpack.c.b16 %v516, %v515
    %v543 = vpack.c.b16 %v518, %v517
    %v544 = vpack.c.b16 %v520, %v519
    %v545 = vpack.c.b16 %v522, %v521
    %v546 = vpack.c.b16 %v524, %v523
    %v547 = vpack.c.b16 %v526, %v525
    %v548 = vpack.c.b16 %v528, %v527
    %v549 = vpack.c.b16 %v530, %v529
    %v550 = vpack.c.b16 %v532, %v531
    %v551 = vpack.c.b16 %v534, %v533
    %v552 = vpack.c.b16 %v536, %v535
    %569 = vmatprep.subr.bf16.mxu0 0
    %570 = vmatpush1.bf16.msra.mxu0 %v544
    %571 = vmatprep.subr.bf16.mxu0 0
    %572 = vmatpush1.bf16.msra.mxu0 %v543
    %573 = vmatprep.subr.bf16.mxu0 0
    %574 = vmatpush1.bf16.msra.mxu0 %v542
    %575 = vmatprep.subr.bf16.mxu0 0
    %576 = vmatpush1.bf16.msra.mxu0 %v541
    %577 = vmatprep.subr.bf16.mxu0 0
    %578 = vmatpush1.bf16.msra.mxu0 %v540
    %579 = vmatprep.subr.bf16.mxu0 0
    %580 = vmatpush1.bf16.msra.mxu0 %v539
    %581 = vmatprep.subr.bf16.mxu0 0
    %582 = vmatpush1.bf16.msra.mxu0 %v538
    %583 = vmatprep.subr.bf16.mxu0 0
    %584 = vmatpush1.bf16.msra.mxu0 %v537
    %585 = vmatprep.subr.bf16.mxu0 0
    %586 = vmatpush2.bf16.msra.mxu0 %v552
    %587 = vmatprep.subr.bf16.mxu0 0
    %588 = vmatpush2.bf16.msra.mxu0 %v551
    %589 = vmatprep.subr.bf16.mxu0 0
    %590 = vmatpush2.bf16.msra.mxu0 %v550
    %591 = vmatprep.subr.bf16.mxu0 0
    %592 = vmatpush2.bf16.msra.mxu0 %v549
    %593 = vmatprep.subr.bf16.mxu0 0
    %594 = vmatpush2.bf16.msra.mxu0 %v548
    %595 = vmatprep.subr.bf16.mxu0 0
    %596 = vmatpush2.bf16.msra.mxu0 %v547
    %597 = vmatprep.subr.bf16.mxu0 0
    %598 = vmatpush2.bf16.msra.mxu0 %v546
    %599 = vmatprep.subr.bf16.mxu0 0
    %600 = vmatpush2.bf16.msra.mxu0 %v545
    %601 = vmatprep.mubr.bf16.mxu0 %v257
    %602 = vmatmul.mubr.bf16.gmra.mxu0 %v256
    %v603 = vpop.f32.mrf.mxu0
    %v604 = vadd.f32 %v471, %v603
    %v605 = vpop.f32.mrf.mxu0
    %v606 = vpop.f32.mrf.mxu0
    %v607 = vadd.f32 %v471, %v606
    %v608 = vpop.f32.mrf.mxu0
    %609 = vdwg.mxu0
    %v610 = vmul.f32 %v604, 1.442695
    %v611 = vpow.pop %v610
    %v612 = vmul.f32 %v607, 1.442695
    %v613 = vpow.pop %v612
    %v614 = vmul.f32 %v611, %v99
    %v615 = vmul.f32 %v613, %v100
    %v616 = vadd.f32 %v428, %v614
    %v617 = vadd.f32 %v431, %v615
    %v618 = vpack.c.bf16 %v617, %v616
    %v619 = vld [vmem:[#allocation7] sm:$0xff]
    %v620 = vld [vmem:[#allocation7 + $0x8] sm:$0xff]
    %v621 = vld [vmem:[#allocation7 + $0x10] sm:$0xff]
    %v622 = vld [vmem:[#allocation7 + $0x18] sm:$0xff]
    %v623 = vld [vmem:[#allocation7 + $0x20] sm:$0xff]
    %v624 = vld [vmem:[#allocation7 + $0x28] sm:$0xff]
    %v625 = vld [vmem:[#allocation7 + $0x30] sm:$0xff]
    %v626 = vld [vmem:[#allocation7 + $0x38] sm:$0xff]
    %v627 = vld [vmem:[%s9] sm:$0x3]
    %v629 = vlaneseq
    %v630 = vshrl.u32 %v629, 7
    %v631 = vsub.s32 0, %v630
    %v632 = vrot.slane %v627, %v631
    %v633 = vlaneseq
    %v634 = vshrl.u32 %v633, 7
    %v635 = vsub.s32 1, %v634
    %v636 = vrot.slane %v627, %v635
    %v647 = vunpack.c.l.b16 %v619
    %v648 = vunpack.c.h.b16 %v619
    %v649 = vunpack.c.l.b16 %v620
    %v650 = vunpack.c.h.b16 %v620
    %v651 = vunpack.c.l.b16 %v621
    %v652 = vunpack.c.h.b16 %v621
    %v653 = vunpack.c.l.b16 %v622
    %v654 = vunpack.c.h.b16 %v622
    %v655 = vunpack.c.l.b16 %v623
    %v656 = vunpack.c.h.b16 %v623
    %v657 = vunpack.c.l.b16 %v624
    %v658 = vunpack.c.h.b16 %v624
    %v659 = vunpack.c.l.b16 %v625
    %v660 = vunpack.c.h.b16 %v625
    %v661 = vunpack.c.l.b16 %v626
    %v662 = vunpack.c.h.b16 %v626
    %v663 = vpack.c.b16 %v649, %v647
    %v664 = vpack.c.b16 %v650, %v648
    %v665 = vpack.c.b16 %v653, %v651
    %v666 = vpack.c.b16 %v654, %v652
    %v667 = vpack.c.b16 %v657, %v655
    %v668 = vpack.c.b16 %v658, %v656
    %v669 = vpack.c.b16 %v661, %v659
    %v670 = vpack.c.b16 %v662, %v660
    %vm679 = vcmask 523264
    %v681 = vsel %vm679, %v618, 0
    %683 = vmatprep.subr.bf16.mxu0 0
    %684 = vmatpush1.bf16.msra.mxu0 0
    %685 = vmatprep.subr.bf16.mxu0 0
    %686 = vmatpush1.bf16.msra.mxu0 0
    %687 = vmatprep.subr.bf16.mxu0 0
    %688 = vmatpush1.bf16.msra.mxu0 0
    %689 = vmatprep.subr.bf16.mxu0 0
    %690 = vmatpush1.bf16.msra.mxu0 0
    %691 = vmatprep.subr.bf16.mxu0 %v670
    %692 = vmatpush1.bf16.msra.mxu0 %v669
    %693 = vmatprep.subr.bf16.mxu0 %v668
    %694 = vmatpush1.bf16.msra.mxu0 %v667
    %695 = vmatprep.subr.bf16.mxu0 %v666
    %696 = vmatpush1.bf16.msra.mxu0 %v665
    %697 = vmatprep.subr.bf16.mxu0 %v664
    %698 = vmatpush1.bf16.msra.mxu0 %v663
    %699 = vmatprep.subr.bf16.mxu0 0
    %700 = vmatpush2.bf16.msra.mxu0 0
    %701 = vmatprep.subr.bf16.mxu0 0
    %702 = vmatpush2.bf16.msra.mxu0 0
    %703 = vmatprep.subr.bf16.mxu0 0
    %704 = vmatpush2.bf16.msra.mxu0 0
    %705 = vmatprep.subr.bf16.mxu0 0
    %706 = vmatpush2.bf16.msra.mxu0 0
    %707 = vmatprep.subr.bf16.mxu0 0
    %708 = vmatpush2.bf16.msra.mxu0 0
    %709 = vmatprep.subr.bf16.mxu0 0
    %710 = vmatpush2.bf16.msra.mxu0 0
    %711 = vmatprep.subr.bf16.mxu0 0
    %712 = vmatpush2.bf16.msra.mxu0 0
    %713 = vmatprep.subr.bf16.mxu0 0
    %714 = vmatpush2.bf16.msra.mxu0 0
    %715 = vmatprep.mubr.bf16.mxu0 0
    %716 = vmatmul.mubr.bf16.gmra.mxu0 %v681
    %v717 = vpop.f32.mrf.mxu0
    %v718 = vadd.f32 %v632, %v717
    %v719 = vpop.f32.mrf.mxu0
    %v720 = vadd.f32 %v636, %v719
    %v721 = vpop.f32.mrf.mxu0
    %v722 = vadd.f32 %v632, %v721
    %v723 = vpop.f32.mrf.mxu0
    %v724 = vadd.f32 %v636, %v723
    %725 = vdwg.mxu0
    %v726 = vtanh.pop %v718
    %v727 = vtanh.pop %v720
    %v728 = vtanh.pop %v722
    %v729 = vtanh.pop %v724
    %v730 = vpack.c.bf16 %v728, %v726
    %v731 = vpack.c.bf16 %v729, %v727
    %v732 = vld [vmem:[%s10] sm:$0xf]
    %v733 = vld [vmem:[%s10 + $0x4] sm:$0xf]
    %v734 = vld [vmem:[%s10 + $0x8] sm:$0xf]
    %v735 = vld [vmem:[%s10 + $0xc] sm:$0xf]
    %v736 = vld [vmem:[%s10 + $0x10] sm:$0xf]
    %v737 = vld [vmem:[%s10 + $0x14] sm:$0xf]
    %v738 = vld [vmem:[%s10 + $0x18] sm:$0xf]
    %v739 = vld [vmem:[%s10 + $0x1c] sm:$0xf]
    %v740 = vld [vmem:[%s10 + $0x20] sm:$0xf]
    %v741 = vld [vmem:[%s10 + $0x24] sm:$0xf]
    %v742 = vld [vmem:[%s10 + $0x28] sm:$0xf]
    %v743 = vld [vmem:[%s10 + $0x2c] sm:$0xf]
    %v744 = vld [vmem:[%s10 + $0x30] sm:$0xf]
    %v745 = vld [vmem:[%s10 + $0x34] sm:$0xf]
    %v746 = vld [vmem:[%s10 + $0x38] sm:$0xf]
    %v747 = vld [vmem:[%s10 + $0x3c] sm:$0xf]
    %v748 = vld [vmem:[%s10 + $0x40] sm:$0xf]
    %v749 = vld [vmem:[%s10 + $0x44] sm:$0xf]
    %v750 = vld [vmem:[%s10 + $0x48] sm:$0xf]
    %v751 = vld [vmem:[%s10 + $0x4c] sm:$0xf]
    %v752 = vld [vmem:[%s10 + $0x50] sm:$0xf]
    %v753 = vld [vmem:[%s10 + $0x54] sm:$0xf]
    %v754 = vld [vmem:[%s10 + $0x58] sm:$0xf]
    %v755 = vld [vmem:[%s10 + $0x5c] sm:$0xf]
    %v756 = vld [vmem:[%s10 + $0x60] sm:$0xf]
    %v757 = vld [vmem:[%s10 + $0x64] sm:$0xf]
    %v758 = vld [vmem:[%s10 + $0x68] sm:$0xf]
    %v759 = vld [vmem:[%s10 + $0x6c] sm:$0xf]
    %v760 = vld [vmem:[%s10 + $0x70] sm:$0xf]
    %v761 = vld [vmem:[%s10 + $0x74] sm:$0xf]
    %v762 = vld [vmem:[%s10 + $0x78] sm:$0xf]
    %v763 = vld [vmem:[%s10 + $0x7c] sm:$0xf]
    %v764 = vld [vmem:[%s11] sm:$0x1]
    %v766 = vlaneseq
    %v767 = vshrl.u32 %v766, 7
    %v768 = vsub.s32 0, %v767
    %v769 = vrot.slane %v764, %v768
    %v803 = vunpack.c.l.b16 %v732
    %v804 = vunpack.c.l.b16 %v733
    %v805 = vunpack.c.l.b16 %v734
    %v806 = vunpack.c.l.b16 %v735
    %v807 = vunpack.c.l.b16 %v736
    %v808 = vunpack.c.l.b16 %v737
    %v809 = vunpack.c.l.b16 %v738
    %v810 = vunpack.c.l.b16 %v739
    %v811 = vunpack.c.l.b16 %v740
    %v812 = vunpack.c.l.b16 %v741
    %v813 = vunpack.c.l.b16 %v742
    %v814 = vunpack.c.l.b16 %v743
    %v815 = vunpack.c.l.b16 %v744
    %v816 = vunpack.c.l.b16 %v745
    %v817 = vunpack.c.l.b16 %v746
    %v818 = vunpack.c.l.b16 %v747
    %v819 = vunpack.c.l.b16 %v748
    %v820 = vunpack.c.l.b16 %v749
    %v821 = vunpack.c.l.b16 %v750
    %v822 = vunpack.c.l.b16 %v751
    %v823 = vunpack.c.l.b16 %v752
    %v824 = vunpack.c.l.b16 %v753
    %v825 = vunpack.c.l.b16 %v754
    %v826 = vunpack.c.l.b16 %v755
    %v827 = vunpack.c.l.b16 %v756
    %v828 = vunpack.c.l.b16 %v757
    %v829 = vunpack.c.l.b16 %v758
    %v830 = vunpack.c.l.b16 %v759
    %v831 = vunpack.c.l.b16 %v760
    %v832 = vunpack.c.l.b16 %v761
    %v833 = vunpack.c.l.b16 %v762
    %v834 = vunpack.c.l.b16 %v763
    %v835 = vpack.c.b16 %v804, %v803
    %v836 = vpack.c.b16 %v806, %v805
    %v837 = vpack.c.b16 %v808, %v807
    %v838 = vpack.c.b16 %v810, %v809
    %v839 = vpack.c.b16 %v812, %v811
    %v840 = vpack.c.b16 %v814, %v813
    %v841 = vpack.c.b16 %v816, %v815
    %v842 = vpack.c.b16 %v818, %v817
    %v843 = vpack.c.b16 %v820, %v819
    %v844 = vpack.c.b16 %v822, %v821
    %v845 = vpack.c.b16 %v824, %v823
    %v846 = vpack.c.b16 %v826, %v825
    %v847 = vpack.c.b16 %v828, %v827
    %v848 = vpack.c.b16 %v830, %v829
    %v849 = vpack.c.b16 %v832, %v831
    %v850 = vpack.c.b16 %v834, %v833
    %867 = vmatprep.subr.bf16.mxu0 0
    %868 = vmatpush1.bf16.msra.mxu0 %v842
    %869 = vmatprep.subr.bf16.mxu0 0
    %870 = vmatpush1.bf16.msra.mxu0 %v841
    %871 = vmatprep.subr.bf16.mxu0 0
    %872 = vmatpush1.bf16.msra.mxu0 %v840
    %873 = vmatprep.subr.bf16.mxu0 0
    %874 = vmatpush1.bf16.msra.mxu0 %v839
    %875 = vmatprep.subr.bf16.mxu0 0
    %876 = vmatpush1.bf16.msra.mxu0 %v838
    %877 = vmatprep.subr.bf16.mxu0 0
    %878 = vmatpush1.bf16.msra.mxu0 %v837
    %879 = vmatprep.subr.bf16.mxu0 0
    %880 = vmatpush1.bf16.msra.mxu0 %v836
    %881 = vmatprep.subr.bf16.mxu0 0
    %882 = vmatpush1.bf16.msra.mxu0 %v835
    %883 = vmatprep.subr.bf16.mxu0 0
    %884 = vmatpush2.bf16.msra.mxu0 %v850
    %885 = vmatprep.subr.bf16.mxu0 0
    %886 = vmatpush2.bf16.msra.mxu0 %v849
    %887 = vmatprep.subr.bf16.mxu0 0
    %888 = vmatpush2.bf16.msra.mxu0 %v848
    %889 = vmatprep.subr.bf16.mxu0 0
    %890 = vmatpush2.bf16.msra.mxu0 %v847
    %891 = vmatprep.subr.bf16.mxu0 0
    %892 = vmatpush2.bf16.msra.mxu0 %v846
    %893 = vmatprep.subr.bf16.mxu0 0
    %894 = vmatpush2.bf16.msra.mxu0 %v845
    %895 = vmatprep.subr.bf16.mxu0 0
    %896 = vmatpush2.bf16.msra.mxu0 %v844
    %897 = vmatprep.subr.bf16.mxu0 0
    %898 = vmatpush2.bf16.msra.mxu0 %v843
    %899 = vmatprep.mubr.bf16.mxu0 %v731
    %900 = vmatmul.mubr.bf16.gmra.mxu0 %v730
    %v901 = vpop.f32.mrf.mxu0
    %v902 = vadd.f32 %v769, %v901
    %v903 = vpop.f32.mrf.mxu0
    %v904 = vpop.f32.mrf.mxu0
    %v905 = vadd.f32 %v769, %v904
    %v906 = vpop.f32.mrf.mxu0
    %907 = vdwg.mxu0
    %v908 = vld [vmem:[%s12] sm:$0xf]
    %v909 = vld [vmem:[%s12 + $0x4] sm:$0xf]
    %v910 = vld [vmem:[%s12 + $0x8] sm:$0xf]
    %v911 = vld [vmem:[%s12 + $0xc] sm:$0xf]
    %v912 = vld [vmem:[%s12 + $0x10] sm:$0xf]
    %v913 = vld [vmem:[%s12 + $0x14] sm:$0xf]
    %v914 = vld [vmem:[%s12 + $0x18] sm:$0xf]
    %v915 = vld [vmem:[%s12 + $0x1c] sm:$0xf]
    %v916 = vld [vmem:[%s12 + $0x20] sm:$0xf]
    %v917 = vld [vmem:[%s12 + $0x24] sm:$0xf]
    %v918 = vld [vmem:[%s12 + $0x28] sm:$0xf]
    %v919 = vld [vmem:[%s12 + $0x2c] sm:$0xf]
    %v920 = vld [vmem:[%s12 + $0x30] sm:$0xf]
    %v921 = vld [vmem:[%s12 + $0x34] sm:$0xf]
    %v922 = vld [vmem:[%s12 + $0x38] sm:$0xf]
    %v923 = vld [vmem:[%s12 + $0x3c] sm:$0xf]
    %v924 = vld [vmem:[%s12 + $0x40] sm:$0xf]
    %v925 = vld [vmem:[%s12 + $0x44] sm:$0xf]
    %v926 = vld [vmem:[%s12 + $0x48] sm:$0xf]
    %v927 = vld [vmem:[%s12 + $0x4c] sm:$0xf]
    %v928 = vld [vmem:[%s12 + $0x50] sm:$0xf]
    %v929 = vld [vmem:[%s12 + $0x54] sm:$0xf]
    %v930 = vld [vmem:[%s12 + $0x58] sm:$0xf]
    %v931 = vld [vmem:[%s12 + $0x5c] sm:$0xf]
    %v932 = vld [vmem:[%s12 + $0x60] sm:$0xf]
    %v933 = vld [vmem:[%s12 + $0x64] sm:$0xf]
    %v934 = vld [vmem:[%s12 + $0x68] sm:$0xf]
    %v935 = vld [vmem:[%s12 + $0x6c] sm:$0xf]
    %v936 = vld [vmem:[%s12 + $0x70] sm:$0xf]
    %v937 = vld [vmem:[%s12 + $0x74] sm:$0xf]
    %v938 = vld [vmem:[%s12 + $0x78] sm:$0xf]
    %v939 = vld [vmem:[%s12 + $0x7c] sm:$0xf]
    %v940 = vld [vmem:[%s13] sm:$0x1]
    %v942 = vlaneseq
    %v943 = vshrl.u32 %v942, 7
    %v944 = vsub.s32 0, %v943
    %v945 = vrot.slane %v940, %v944
    %v979 = vunpack.c.l.b16 %v908
    %v980 = vunpack.c.l.b16 %v909
    %v981 = vunpack.c.l.b16 %v910
    %v982 = vunpack.c.l.b16 %v911
    %v983 = vunpack.c.l.b16 %v912
    %v984 = vunpack.c.l.b16 %v913
    %v985 = vunpack.c.l.b16 %v914
    %v986 = vunpack.c.l.b16 %v915
    %v987 = vunpack.c.l.b16 %v916
    %v988 = vunpack.c.l.b16 %v917
    %v989 = vunpack.c.l.b16 %v918
    %v990 = vunpack.c.l.b16 %v919
    %v991 = vunpack.c.l.b16 %v920
    %v992 = vunpack.c.l.b16 %v921
    %v993 = vunpack.c.l.b16 %v922
    %v994 = vunpack.c.l.b16 %v923
    %v995 = vunpack.c.l.b16 %v924
    %v996 = vunpack.c.l.b16 %v925
    %v997 = vunpack.c.l.b16 %v926
    %v998 = vunpack.c.l.b16 %v927
    %v999 = vunpack.c.l.b16 %v928
    %v1000 = vunpack.c.l.b16 %v929
    %v1001 = vunpack.c.l.b16 %v930
    %v1002 = vunpack.c.l.b16 %v931
    %v1003 = vunpack.c.l.b16 %v932
    %v1004 = vunpack.c.l.b16 %v933
    %v1005 = vunpack.c.l.b16 %v934
    %v1006 = vunpack.c.l.b16 %v935
    %v1007 = vunpack.c.l.b16 %v936
    %v1008 = vunpack.c.l.b16 %v937
    %v1009 = vunpack.c.l.b16 %v938
    %v1010 = vunpack.c.l.b16 %v939
    %v1011 = vpack.c.b16 %v980, %v979
    %v1012 = vpack.c.b16 %v982, %v981
    %v1013 = vpack.c.b16 %v984, %v983
    %v1014 = vpack.c.b16 %v986, %v985
    %v1015 = vpack.c.b16 %v988, %v987
    %v1016 = vpack.c.b16 %v990, %v989
    %v1017 = vpack.c.b16 %v992, %v991
    %v1018 = vpack.c.b16 %v994, %v993
    %v1019 = vpack.c.b16 %v996, %v995
    %v1020 = vpack.c.b16 %v998, %v997
    %v1021 = vpack.c.b16 %v1000, %v999
    %v1022 = vpack.c.b16 %v1002, %v1001
    %v1023 = vpack.c.b16 %v1004, %v1003
    %v1024 = vpack.c.b16 %v1006, %v1005
    %v1025 = vpack.c.b16 %v1008, %v1007
    %v1026 = vpack.c.b16 %v1010, %v1009
    %1043 = vmatprep.subr.bf16.mxu0 0
    %1044 = vmatpush1.bf16.msra.mxu0 %v1018
    %1045 = vmatprep.subr.bf16.mxu0 0
    %1046 = vmatpush1.bf16.msra.mxu0 %v1017
    %1047 = vmatprep.subr.bf16.mxu0 0
    %1048 = vmatpush1.bf16.msra.mxu0 %v1016
    %1049 = vmatprep.subr.bf16.mxu0 0
    %1050 = vmatpush1.bf16.msra.mxu0 %v1015
    %1051 = vmatprep.subr.bf16.mxu0 0
    %1052 = vmatpush1.bf16.msra.mxu0 %v1014
    %1053 = vmatprep.subr.bf16.mxu0 0
    %1054 = vmatpush1.bf16.msra.mxu0 %v1013
    %1055 = vmatprep.subr.bf16.mxu0 0
    %1056 = vmatpush1.bf16.msra.mxu0 %v1012
    %1057 = vmatprep.subr.bf16.mxu0 0
    %1058 = vmatpush1.bf16.msra.mxu0 %v1011
    %1059 = vmatprep.subr.bf16.mxu0 0
    %1060 = vmatpush2.bf16.msra.mxu0 %v1026
    %1061 = vmatprep.subr.bf16.mxu0 0
    %1062 = vmatpush2.bf16.msra.mxu0 %v1025
    %1063 = vmatprep.subr.bf16.mxu0 0
    %1064 = vmatpush2.bf16.msra.mxu0 %v1024
    %1065 = vmatprep.subr.bf16.mxu0 0
    %1066 = vmatpush2.bf16.msra.mxu0 %v1023
    %1067 = vmatprep.subr.bf16.mxu0 0
    %1068 = vmatpush2.bf16.msra.mxu0 %v1022
    %1069 = vmatprep.subr.bf16.mxu0 0
    %1070 = vmatpush2.bf16.msra.mxu0 %v1021
    %1071 = vmatprep.subr.bf16.mxu0 0
    %1072 = vmatpush2.bf16.msra.mxu0 %v1020
    %1073 = vmatprep.subr.bf16.mxu0 0
    %1074 = vmatpush2.bf16.msra.mxu0 %v1019
    %1075 = vmatprep.mubr.bf16.mxu0 %v731
    %1076 = vmatmul.mubr.bf16.gmra.mxu0 %v730
    %v1077 = vpop.f32.mrf.mxu0
    %v1078 = vadd.f32 %v945, %v1077
    %v1079 = vpop.f32.mrf.mxu0
    %v1080 = vpop.f32.mrf.mxu0
    %v1081 = vadd.f32 %v945, %v1080
    %v1082 = vpop.f32.mrf.mxu0
    %1083 = vdwg.mxu0
    %v1084 = vmul.f32 %v902, 0.5
    %v1085 = vmul.f32 %v905, 0.5
    %v1086 = vtanh.pop %v1084
    %v1087 = vtanh.pop %v1085
    %v1088 = vadd.f32 %v1086, 1.0
    %v1089 = vadd.f32 %v1087, 1.0
    %v1090 = vmul.f32 %v1088, 0.5
    %v1091 = vmul.f32 %v1089, 0.5
    %v1092 = vpack.c.bf16 %v1091, %v1090
    %v1094 = vunpack.c.l.b16 %v1092
    %v1095 = vunpack.c.h.b16 %v1092
    %v1096 = vpack.c.b16 %v1094, %v1094
    %v1097 = vpack.c.b16 %v1095, %v1095
    %1100 = vst [vmem:[#allocation8] sm:$0xf] %v1096
    %1101 = vst [vmem:[#allocation8 + $0x4] sm:$0xf] %v1097
    %v1102 = vpack.c.bf16 %v1081, %v1078
    %v1104 = vunpack.c.l.b16 %v1102
    %v1105 = vunpack.c.h.b16 %v1102
    %v1106 = vpack.c.b16 %v1104, %v1104
    %v1107 = vpack.c.b16 %v1105, %v1105
    %1110 = vst [vmem:[#allocation9] sm:$0xf] %v1106
    %1111 = vst [vmem:[#allocation9 + $0x4] sm:$0xf] %v1107
    %1112 = vst.msk [vmem:[#allocation11] sm:$0xff] %vm679, %v428
    %1113 = vst.msk [vmem:[#allocation11 + $0x8] sm:$0xff] %vm679, %v431
    %1114 = vst.msk [vmem:[#allocation12] sm:$0xff] %vm679, %v604
    %1115 = vst.msk [vmem:[#allocation12 + $0x8] sm:$0xff] %vm679, %v607
    // Predicated region
    $region70: #{tpu_custom_call.1} parent=1 // pred_check
      _
    $region71: #{tpu_custom_call.1} parent=1 // pred_check_branch
      %1117 = sbr.rel (0) target = $region73
    $region72: #{tpu_custom_call.1} parent=1 // pred_region
      %s1119 = ssub.s32 128, 128
      %1120 = vsyncadd [#allocation4], %s1119
      %s1121 = sshll.u32 [#allocation8], 4
      %s1122 = int_to_ptr.vmem [resolvable:$true] %s1121
      %1127 = dma.vmem_to_hbm [thread:$0]  %s1122, 128, %s14, [#allocation4], 64, 64, 4
    $region73: #{tpu_custom_call.1} parent=1 // pred_fallthru
      _
    // Predicated region
    $region74: #{tpu_custom_call.1} parent=1 // pred_check
      _
    $region75: #{tpu_custom_call.1} parent=1 // pred_check_branch
      %1129 = sbr.rel (0) target = $region77
    $region76: #{tpu_custom_call.1} parent=1 // pred_region
      %s1131 = ssub.s32 128, 128
      %1132 = vsyncadd [#allocation10], %s1131
      %s1133 = sshll.u32 [#allocation9], 4
      %s1134 = int_to_ptr.vmem [resolvable:$true] %s1133
      %1139 = dma.vmem_to_hbm [thread:$0]  %s1134, 128, %s15, [#allocation10], 64, 64, 4
    $region77: #{tpu_custom_call.1} parent=1 // pred_fallthru
      _
    // Predicated region
    $region78: #{tpu_custom_call.1} parent=1 // pred_check
      _
    $region79: #{tpu_custom_call.1} parent=1 // pred_check_branch
      %1141 = sbr.rel (0) target = $region81
    $region80: #{tpu_custom_call.1} parent=1 // pred_region
      %s1143 = ssub.s32 256, 256
      %1144 = vsyncadd [#allocation10], %s1143
      %s1145 = sshll.u32 [#allocation11], 4
      %s1146 = int_to_ptr.vmem [resolvable:$true] %s1145
      %1151 = dma.vmem_to_hbm [thread:$0]  %s1146, 256, %s16, [#allocation10], 128, 128, 8
    $region81: #{tpu_custom_call.1} parent=1 // pred_fallthru
      _
    // Predicated region
    $region82: #{tpu_custom_call.1} parent=1 // pred_check
      _
    $region83: #{tpu_custom_call.1} parent=1 // pred_check_branch
      %1153 = sbr.rel (0) target = $region85
    $region84: #{tpu_custom_call.1} parent=1 // pred_region
      %s1155 = ssub.s32 256, 256
      %1156 = vsyncadd [#allocation13], %s1155
      %s1157 = sshll.u32 [#allocation12], 4
      %s1158 = int_to_ptr.vmem [resolvable:$true] %s1157
      %1163 = dma.vmem_to_hbm [thread:$0]  %s1158, 256, %s17, [#allocation13], 128, 128, 8
    $region85: #{tpu_custom_call.1} parent=1 // pred_fallthru
      _
    // Predicated region
    $region86: #{tpu_custom_call.1} parent=1 // pred_check
      _
    $region87: #{tpu_custom_call.1} parent=1 // pred_check_branch
      %1165 = sbr.rel (0) target = $region89
    $region88: #{tpu_custom_call.1} parent=1 // pred_region
      %1166 = dma.done [#allocation4], 128
    $region89: #{tpu_custom_call.1} parent=1 // pred_fallthru
      _
    // Predicated region
    $region90: #{tpu_custom_call.1} parent=1 // pred_check
      _
    $region91: #{tpu_custom_call.1} parent=1 // pred_check_branch
      %1168 = sbr.rel (0) target = $region93
    $region92: #{tpu_custom_call.1} parent=1 // pred_region
      %1169 = dma.done [#allocation10], 128
    $region93: #{tpu_custom_call.1} parent=1 // pred_fallthru
      _
    // Predicated region
    $region94: #{tpu_custom_call.1} parent=1 // pred_check
      _
    $region95: #{tpu_custom_call.1} parent=1 // pred_check_branch
      %1171 = sbr.rel (0) target = $region97
    $region96: #{tpu_custom_call.1} parent=1 // pred_region
      %1172 = dma.done [#allocation10], 256
    $region97: #{tpu_custom_call.1} parent=1 // pred_fallthru
      _
    // Predicated region
    $region98: #{tpu_custom_call.1} parent=1 // pred_check
      _
    $region99: #{tpu_custom_call.1} parent=1 // pred_check_branch
      %1174 = sbr.rel (0) target = $region101
    $region100: #{tpu_custom_call.1} parent=1 // pred_region
      %1175 = dma.done [#allocation13], 256
    $region101: #{tpu_custom_call.1} parent=1 // pred_fallthru
      _
    %1176 = vsyncpa [#allocation3], 1
    %1177 = vsyncpa [#allocation6], 1
    %1178 = vsyncpa [#allocation4], 1
    %1179 = vsyncpa [#allocation10], 1
    %1180 = vsyncpa [#allocation13], 1

</llo_original>
